<compile_context>
chip_gen: v7x
topology: tpu7x:2x2x1
jax: 0.10.0
libtpu: 0.0.40
codegen_flags: <defaults>
</compile_context>

<pallas_src>
import numpy as np
import jax
import jax.numpy as jnp
from jax.experimental import pallas as pl
from jax.experimental.pallas import tpu as pltpu


# ---------------------------------------------------------------------------
# Host-side constant prep (exactly matches Anchors.generate_anchors).
# ---------------------------------------------------------------------------
def generate_anchors(base_size=16, ratios=None, scales=None):
    if ratios is None:
        ratios = np.array([0.5, 1, 2])
    if scales is None:
        scales = np.array([2 ** 0, 2 ** (1.0 / 3.0), 2 ** (2.0 / 3.0)])
    num_anchors = len(ratios) * len(scales)
    anchors = np.zeros((num_anchors, 4))
    anchors[:, 2:] = base_size * np.tile(scales, (2, len(ratios))).T
    areas = anchors[:, 2] * anchors[:, 3]
    anchors[:, 2] = np.sqrt(areas / np.repeat(ratios, len(scales)))
    anchors[:, 3] = anchors[:, 2] * np.repeat(ratios, len(scales))
    anchors[:, 0::2] -= np.tile(anchors[:, 2] * 0.5, (2, 1)).T
    anchors[:, 1::2] -= np.tile(anchors[:, 3] * 0.5, (2, 1)).T
    return anchors


def _row_templates(base_anchors, feat_w, stride):
    """Host prep: per-row constant and y-stride templates, shape (1, W*A*4)."""
    A = base_anchors.shape[0]
    J = A * 4
    base = base_anchors.reshape(-1).astype(np.float64)              # (J,)
    xs = (np.arange(feat_w, dtype=np.float64) + 0.5) * stride       # (W,)
    c = np.arange(J) % 4
    is_x = (c % 2 == 0).astype(np.float64)                          # x1/x2 lanes
    row_const = base[None, :] + xs[:, None] * is_x[None, :]         # (W, J)
    row_ystr = np.tile((1.0 - is_x) * float(stride), (feat_w, 1))   # (W, J)
    wj = feat_w * J
    return (row_const.reshape(1, wj).astype(np.float32),
            row_ystr.reshape(1, wj).astype(np.float32))


# ---------------------------------------------------------------------------
# Pallas kernel: out[y, :] = row_const + (y + 0.5) * row_ystride
# ---------------------------------------------------------------------------
def _shift_rows_kernel(row_const_ref, row_y_ref, o_ref):
    th = o_ref.shape[0]
    y0 = pl.program_id(0) * th
    y = jax.lax.broadcasted_iota(jnp.int32, (th, 1), 0) + y0
    yf = y.astype(jnp.float32) + 0.5
    o_ref[...] = row_const_ref[...] + yf * row_y_ref[...]


def _choose_th(feat_h, row_bytes, target_bytes=4 << 20):
    """Rows per output block: ~target_bytes per block, sublane-aligned when a
    partial tiling is used, and >=2 grid steps when there is enough work so
    the 'parallel' axis can shard across both TensorCores on v7x."""
    th = max(1, target_bytes // max(row_bytes, 1))
    if feat_h >= 16:
        th = min(th, -(-feat_h // 2))          # at least 2 grid steps
    if th >= feat_h:
        return feat_h                          # single full block
    th = (th // 8) * 8                         # (8,128) rule on the sublane dim
    if th == 0:
        th = 8 if feat_h > 8 else feat_h
    return th


def _level_anchors(base_anchors, feat_h, feat_w, stride):
    """Shifted anchors for one pyramid level -> (H*W*A, 4) float32."""
    A = base_anchors.shape[0]
    J = A * 4
    wj = feat_w * J
    row_const, row_ystr = _row_templates(base_anchors, feat_w, stride)

    th = _choose_th(feat_h, wj * 4)
    grid = (pl.cdiv(feat_h, th),)

    out_bytes = feat_h * wj * 4
    cost = pl.CostEstimate(flops=2 * feat_h * wj, transcendentals=0,
                           bytes_accessed=out_bytes + 2 * wj * 4)

    out = pl.pallas_call(
        _shift_rows_kernel,
        out_shape=jax.ShapeDtypeStruct((feat_h, wj), jnp.float32),
        grid=grid,
        in_specs=[pl.BlockSpec((1, wj), lambda i: (0, 0)),
                  pl.BlockSpec((1, wj), lambda i: (0, 0))],
        out_specs=pl.BlockSpec((th, wj), lambda i: (i, 0)),
        compiler_params=pltpu.CompilerParams(
            dimension_semantics=("parallel",)),
        cost_estimate=cost,
    )(jnp.asarray(row_const), jnp.asarray(row_ystr))

    # (feat_h, W*A*4) is already the final row-major (y, x, a, c) order:
    # this reshape is a free view, no copy / slice needed.
    return out.reshape(feat_h * feat_w * A, 4)


def anchors_forward(size, pyramid_levels=None, strides=None, sizes=None,
                    ratios=None, scales=None):
    """JAX/Pallas equivalent of Anchors().forward() -> (total_anchors, 4) f32."""
    size = np.array(size)
    pyramid_levels = pyramid_levels or [3, 4, 5, 6, 7]
    strides = strides or [2 ** x for x in pyramid_levels]
    sizes = sizes or [2 ** (x + 2) for x in pyramid_levels]

    outs = []
    for lvl, stride, base_size in zip(pyramid_levels, strides, sizes):
        shape = (size + 2 ** lvl - 1) // (2 ** lvl)
        base = generate_anchors(base_size=base_size, ratios=ratios, scales=scales)
        outs.append(_level_anchors(base, int(shape[0]), int(shape[1]), stride))
    return jnp.concatenate(outs, axis=0)


# ---------------------------------------------------------------------------
# Pure-numpy reference (direct port of the PyTorch module) for verification.
# ---------------------------------------------------------------------------
def _np_shift(shape, stride, anchors):
    shift_x = (np.arange(0, shape[1]) + 0.5) * stride
    shift_y = (np.arange(0, shape[0]) + 0.5) * stride
    shift_x, shift_y = np.meshgrid(shift_x, shift_y)
    shifts = np.vstack((shift_x.ravel(), shift_y.ravel(),
                        shift_x.ravel(), shift_y.ravel())).transpose()
    A = anchors.shape[0]
    K = shifts.shape[0]
    all_anchors = (anchors.reshape((1, A, 4)) +
                   shifts.reshape((1, K, 4)).transpose((1, 0, 2)))
    return all_anchors.reshape((K * A, 4))


def _np_anchors_forward(size, pyramid_levels=None, strides=None, sizes=None,
                        ratios=None, scales=None):
    size = np.array(size)
    pyramid_levels = pyramid_levels or [3, 4, 5, 6, 7]
    strides = strides or [2 ** x for x in pyramid_levels]
    sizes = sizes or [2 ** (x + 2) for x in pyramid_levels]
    image_shapes = ((size + 2 ** x - 1) // 2 ** x for x in pyramid_levels)
    all_anchors = np.zeros((0, 4), dtype=np.float32)
    for base_size, stride, shape in zip(sizes, strides, image_shapes):
        anchors = generate_anchors(base_size=base_size, ratios=ratios, scales=scales)
        all_anchors = np.append(all_anchors, _np_shift(shape, stride, anchors), axis=0)
    return all_anchors.astype(np.float32)


if __name__ == "__main__":
    _ = jax.random.PRNGKey(0)   # Anchors.forward() takes no tensor inputs.
    IMAGE_SIZE = (128, 128)     # small: pyramid feature maps 16, 8, 4, 2, 1

    out = anchors_forward(IMAGE_SIZE)
    out = jax.block_until_ready(out)

    ref = _np_anchors_forward(IMAGE_SIZE)
    assert out.shape == ref.shape, (out.shape, ref.shape)
    assert out.dtype == jnp.float32
    np.testing.assert_allclose(np.asarray(out), ref, rtol=1e-5, atol=1e-3)
    print("KERNEL_OK")
</pallas_src>

<mosaic_0001>
module attributes {stable_mosaic.version = 11 : i64} {
  func.func @_shift_rows_kernel(%arg0: i32, %arg1: memref<1x576xf32, #tpu.memory_space<vmem>>, %arg2: memref<1x576xf32, #tpu.memory_space<vmem>>, %arg3: memref<8x576xf32, #tpu.memory_space<vmem>>) attributes {dimension_semantics = [#tpu.dimension_semantics<parallel>], iteration_bounds = array<i64: 2>, scalar_prefetch = 0 : i64, scratch_operands = 0 : i64, tpu.core_type = #tpu.core_type<tc>, window_params = [{pipeline_mode = #tpu.pipeline_mode<synchronous>, transform_indices = @transform_0, window_bounds = array<i64: 1, 576>}, {pipeline_mode = #tpu.pipeline_mode<synchronous>, transform_indices = @transform_1, window_bounds = array<i64: 1, 576>}, {transform_indices = @transform_2, window_bounds = array<i64: 8, 576>}]} {
    %c8_i32 = arith.constant 8 : i32
    %0 = arith.muli %arg0, %c8_i32 : i32
    %1 = tpu.iota {dimensions = array<i32: 0>} : vector<8x1xi32>
    %2 = vector.broadcast %0 : i32 to vector<8x1xi32>
    %3 = arith.addi %1, %2 : vector<8x1xi32>
    %4 = arith.sitofp %3 : vector<8x1xi32> to vector<8x1xf32>
    %cst = arith.constant 5.000000e-01 : f32
    %5 = vector.broadcast %cst : f32 to vector<8x1xf32>
    %6 = arith.addf %4, %5 : vector<8x1xf32>
    %c0 = arith.constant 0 : index
    %c0_0 = arith.constant 0 : index
    %7 = vector.load %arg1[%c0, %c0_0] : memref<1x576xf32, #tpu.memory_space<vmem>>, vector<1x576xf32>
    %c0_1 = arith.constant 0 : index
    %c0_2 = arith.constant 0 : index
    %8 = vector.load %arg2[%c0_1, %c0_2] : memref<1x576xf32, #tpu.memory_space<vmem>>, vector<1x576xf32>
    %9 = vector.broadcast %6 : vector<8x1xf32> to vector<8x576xf32>
    %10 = vector.broadcast %8 : vector<1x576xf32> to vector<8x576xf32>
    %11 = arith.mulf %9, %10 : vector<8x576xf32>
    %12 = vector.broadcast %7 : vector<1x576xf32> to vector<8x576xf32>
    %13 = arith.addf %12, %11 : vector<8x576xf32>
    %c0_3 = arith.constant 0 : index
    %c0_4 = arith.constant 0 : index
    %14 = vector.load %arg3[%c0_3, %c0_4] : memref<8x576xf32, #tpu.memory_space<vmem>>, vector<8x576xf32>
    tpu.vector_store %arg3[%c0_3, %c0_4], %13 {strides = array<i32>} : memref<8x576xf32, #tpu.memory_space<vmem>>, vector<8x576xf32>,
    return
  }
  func.func @transform_0(%arg0: i32) -> (i32, i32) {
    %c0_i32 = arith.constant 0 : i32
    %c0_i32_0 = arith.constant 0 : i32
    %c0_i32_1 = arith.constant 0 : i32
    return %c0_i32, %c0_i32_0 : i32, i32
  }
  func.func @transform_1(%arg0: i32) -> (i32, i32) {
    %c0_i32 = arith.constant 0 : i32
    %c0_i32_0 = arith.constant 0 : i32
    %c0_i32_1 = arith.constant 0 : i32
    return %c0_i32, %c0_i32_0 : i32, i32
  }
  func.func @transform_2(%arg0: i32) -> (i32, i32) {
    %c0_i32 = arith.constant 0 : i32
    %c0_i32_0 = arith.constant 0 : i32
    return %arg0, %c0_i32 : i32, i32
  }
}

</mosaic_0001>

<llo_original>
// kernel: tpu_custom_call.1
$region0: #{tpu_custom_call.1}
  #allocation0 [shape = 'u32[]', space=smem, size = 0x4, offset = 0x4, fixed_abs, tag = 'smem constant byte address 0x4 - core index']
  #allocation1 [shape = 'u32[144,128]{1,0:T(1,128)}', space=vmem, size = 0x12000, scoped, tag = 'internal scratch']
  %s0 = inlined_call_operand.hbm [shape: f32[1,576], index: 0, kind: input, shape index: {}]
  %s1 = inlined_call_operand.hbm [shape: f32[1,576], index: 1, kind: input, shape index: {}]
  %s2 = inlined_call_operand.hbm [shape: f32[16,576], index: 2, kind: output, shape index: {}]
  %s3 = sld [smem:[#allocation0]]
  $region49: #{tpu_custom_call.1} parent=0
    _
  %s5 = ssub.s32 1, %s3
  %s6 = scalar_select 0, %s5, %s3
  $region1: #{tpu_custom_call.1} parent=0
    #allocation2 [shape = 'u8[2560]{0}', space=vmem, size = 0xc00, scoped, tag = 'input window, operand 0, single buffered']
    #allocation3 [shape = 's32[2]{0}', space=sflag, size = 0x8, scoped, tag = 'scoped memory for tpu_custom_call.1']
    #allocation4 [shape = 's32[2]{0}', space=sflag, size = 0x8, scoped, tag = 'scoped memory for tpu_custom_call.1']
    #allocation5 [shape = 'u8[2560]{0}', space=vmem, size = 0xc00, scoped, tag = 'input window, operand 1, single buffered']
    #allocation6 [shape = 's32[1]{0}', space=sflag, size = 0x4, scoped, tag = 'scoped memory for tpu_custom_call.1']
    #allocation7 [shape = 'u8[40960]{0}', space=vmem, size = 0xa000, scoped, tag = 'output window, operand 0']
    %7 = vsyncpa [#allocation3], 0
    %8 = vsyncpa [#allocation6], 0
    %9 = vsyncpa [#allocation4], 0
    %s10 = scalar_lea.sflag [#allocation4], 1
    %11 = vsyncpa %s10, 0
    loop: start=0, step=1, limit=4
    $region2: #{tpu_custom_call.1} parent=1 // loop_pre_header
      _
    $region3: #{tpu_custom_call.1} parent=1 // loop_header
      %s13 = sphi 0, %s17
      %p14 = scmp.ge.s32.totalorder %s13, 4
      %s21 = sphi 0, %s21
      %s23 = sphi 0, %s21
      %s24 = sphi 0, %s23
      %s38 = sphi 0, %s24
      %s42 = sphi 0, %s42
      %s44 = sphi 0, %s42
      %s45 = sphi 0, %s44
      %s59 = sphi 0, %s45
      %s65 = sphi 0, %s67
      %s68 = sphi 0, %s65
      %s69 = sphi 0, %s68
      %s85 = sphi 0, %s69
    $region4: #{tpu_custom_call.1} parent=1 // loop_header_branch
      %16 = sbr.rel (%p14) target = $region8
    $region5: #{tpu_custom_call.1} parent=1 // loop_body
      %s18 = ssub.s32 %s13, 1
      %s19 = ssub.s32 %s13, 2
      %s20 = sadd.s32 %s13, 1
      %s22 = sadd.s32 %s21, 1
      %p25 = scmp.eq.s32.totalorder %s13, 1
      %p26 = scmp.ne.s32.totalorder %s21, %s23
      %p27 = scmp.eq.s32.totalorder %s13, 0
      %p28 = por %p26, %p27
      %p29 = scmp.ne.s32.totalorder %s21, %s23
      %p30 = scmp.eq.s32.totalorder %s18, 1
      %p31 = por %p29, %p30
      %p32 = scmp.ne.s32.totalorder %s23, %s24
      %p33 = scmp.eq.s32.totalorder %s18, 0
      %p34 = por %p32, %p33
      %p35 = scmp.ne.s32.totalorder %s23, %s24
      %p36 = scmp.eq.s32.totalorder %s19, 1
      %p37 = por %p35, %p36
      %p39 = scmp.ne.s32.totalorder %s24, %s38
      %p40 = scmp.eq.s32.totalorder %s19, 0
      %p41 = por %p39, %p40
      %s43 = sadd.s32 %s42, 1
      %p46 = scmp.eq.s32.totalorder %s13, 1
      %p47 = scmp.ne.s32.totalorder %s42, %s44
      %p48 = scmp.eq.s32.totalorder %s13, 0
      %p49 = por %p47, %p48
      %p50 = scmp.ne.s32.totalorder %s42, %s44
      %p51 = scmp.eq.s32.totalorder %s18, 1
      %p52 = por %p50, %p51
      %p53 = scmp.ne.s32.totalorder %s44, %s45
      %p54 = scmp.eq.s32.totalorder %s18, 0
      %p55 = por %p53, %p54
      %p56 = scmp.ne.s32.totalorder %s44, %s45
      %p57 = scmp.eq.s32.totalorder %s19, 1
      %p58 = por %p56, %p57
      %p60 = scmp.ne.s32.totalorder %s45, %s59
      %p61 = scmp.eq.s32.totalorder %s19, 0
      %p62 = por %p60, %p61
      %s63 = ssub.s32 %s13, %s20
      %p64 = scmp.eq.s32.totalorder %s63, 0
      %s66 = sadd.s32 %s65, 1
      %s67 = scalar_select %p64, %s65, %s66
      %p70 = pneg %p64
      %p71 = scmp.eq.s32.totalorder %s13, 1
      %p72 = por %p70, %p71
      %p73 = scmp.ne.s32.totalorder %s65, %s68
      %p74 = scmp.eq.s32.totalorder %s13, 0
      %p75 = por %p73, %p74
      %p76 = scmp.ne.s32.totalorder %s65, %s68
      %p77 = scmp.eq.s32.totalorder %s18, 1
      %p78 = por %p76, %p77
      %p79 = scmp.ne.s32.totalorder %s68, %s69
      %p80 = scmp.eq.s32.totalorder %s18, 0
      %p81 = por %p79, %p80
      %p82 = scmp.ne.s32.totalorder %s68, %s69
      %p83 = scmp.eq.s32.totalorder %s19, 1
      %p84 = por %p82, %p83
      %p86 = scmp.ne.s32.totalorder %s69, %s85
      %p87 = scmp.eq.s32.totalorder %s19, 0
      %p88 = por %p86, %p87
      %p89 = scmp.le.s32.totalorder 1, %s13
      %p90 = scmp.lt.s32.totalorder %s13, 3
      %p91 = pnand %p89, %p90
      %p92 = pneg %p91
      // Predicated region
      $region9: #{tpu_custom_call.1} parent=5 // pred_check
        _
      $region10: #{tpu_custom_call.1} parent=5 // pred_check_branch
        %94 = sbr.rel (%p91) target = $region12
      $region11: #{tpu_custom_call.1} parent=5 // pred_region
        %s95 = ssub.s32 %s13, 1
        // Predicated region
        $region13: #{tpu_custom_call.1} parent=11 // pred_check
          %p96 = pneg %p34
        $region14: #{tpu_custom_call.1} parent=11 // pred_check_branch
          %98 = sbr.rel (%p96) target = $region16
        $region15: #{tpu_custom_call.1} parent=11 // pred_region
          %s100 = ssub.s32 80, 80
          %101 = vsyncadd [#allocation3], %s100
          %s103 = sshll.u32 [#allocation2], 4
          %s104 = int_to_ptr.vmem [resolvable:$true] %s103
          %106 = dma.hbm_to_vmem [thread:$0]  %s0, 80, %s104, [#allocation3]
        $region16: #{tpu_custom_call.1} parent=11 // pred_fallthru
          _
        // Predicated region
        $region17: #{tpu_custom_call.1} parent=11 // pred_check
          %p107 = pneg %p55
        $region18: #{tpu_custom_call.1} parent=11 // pred_check_branch
          %109 = sbr.rel (%p107) target = $region20
        $region19: #{tpu_custom_call.1} parent=11 // pred_region
          %s111 = ssub.s32 80, 80
          %112 = vsyncadd [#allocation6], %s111
          %s114 = sshll.u32 [#allocation5], 4
          %s115 = int_to_ptr.vmem [resolvable:$true] %s114
          %117 = dma.hbm_to_vmem [thread:$0]  %s1, 80, %s115, [#allocation6]
        $region20: #{tpu_custom_call.1} parent=11 // pred_fallthru
          _
      $region12: #{tpu_custom_call.1} parent=5 // pred_fallthru
        _
      %p118 = scmp.lt.s32.totalorder %s13, 2
      // Predicated region
      $region21: #{tpu_custom_call.1} parent=5 // pred_check
        %p119 = pneg %p118
      $region22: #{tpu_custom_call.1} parent=5 // pred_check_branch
        %121 = sbr.rel (%p119) target = $region24
      $region23: #{tpu_custom_call.1} parent=5 // pred_region
        _
      $region24: #{tpu_custom_call.1} parent=5 // pred_fallthru
        _
      %p122 = scmp.le.s32.totalorder 1, %s13
      %p123 = scmp.lt.s32.totalorder %s13, 3
      %p124 = pnand %p122, %p123
      %p125 = pneg %p124
      // Predicated region
      $region25: #{tpu_custom_call.1} parent=5 // pred_check
        _
      $region26: #{tpu_custom_call.1} parent=5 // pred_check_branch
        %127 = sbr.rel (%p124) target = $region28
      $region27: #{tpu_custom_call.1} parent=5 // pred_region
        %s128 = ssub.s32 %s13, 1
        // Predicated region
        $region29: #{tpu_custom_call.1} parent=27 // pred_check
          %p129 = pneg %p34
        $region30: #{tpu_custom_call.1} parent=27 // pred_check_branch
          %131 = sbr.rel (%p129) target = $region32
        $region31: #{tpu_custom_call.1} parent=27 // pred_region
          %132 = dma.done [#allocation3], 80
        $region32: #{tpu_custom_call.1} parent=27 // pred_fallthru
          _
        // Predicated region
        $region33: #{tpu_custom_call.1} parent=27 // pred_check
          %p133 = pneg %p55
        $region34: #{tpu_custom_call.1} parent=27 // pred_check_branch
          %135 = sbr.rel (%p133) target = $region36
        $region35: #{tpu_custom_call.1} parent=27 // pred_region
          %136 = dma.done [#allocation6], 80
        $region36: #{tpu_custom_call.1} parent=27 // pred_fallthru
          _
        %p137 = pneg %p34
        %p138 = pneg %p31
        %p139 = pneg %p55
        %p140 = pneg %p52
        %p141 = pneg %p81
        %p142 = pneg %p78
        %s143 = sand.u32 %s68, 1
        %s144 = scalar_lea.sflag [#allocation4], %s143
        %s145 = sand.u32 %s68, 1
        %s146 = smul.addr %s145, 40
        %s147 = scalar_lea.vmem [#allocation7], %s146
        %s148 = smul.u32 %s18, 8
        %v149 = vlaneseq
        %v150 = vshrl.u32 %v149, 7
        %v151 = vstv %s148
        %v152 = vadd.s32 %v150, %v151
        %v153 = vcvt.s32.f32 %v152
        %v154 = vadd.f32 %v153, 0.5
        %v155 = vld [vmem:[#allocation2] sm:$0x1f]
        %v156 = vld [vmem:[#allocation5] sm:$0x1f]
        %v158 = vlaneseq
        %v159 = vshrl.u32 %v158, 7
        %v160 = vsub.s32 0, %v159
        %v161 = vrot.slane %v156, %v160
        %v162 = vlaneseq
        %v163 = vshrl.u32 %v162, 7
        %v164 = vsub.s32 1, %v163
        %v165 = vrot.slane %v156, %v164
        %v166 = vlaneseq
        %v167 = vshrl.u32 %v166, 7
        %v168 = vsub.s32 2, %v167
        %v169 = vrot.slane %v156, %v168
        %v170 = vlaneseq
        %v171 = vshrl.u32 %v170, 7
        %v172 = vsub.s32 3, %v171
        %v173 = vrot.slane %v156, %v172
        %v174 = vlaneseq
        %v175 = vshrl.u32 %v174, 7
        %v176 = vsub.s32 4, %v175
        %v177 = vrot.slane %v156, %v176
        %v183 = vmul.f32 %v154, %v161
        %v184 = vmul.f32 %v154, %v165
        %v185 = vmul.f32 %v154, %v169
        %v186 = vmul.f32 %v154, %v173
        %v187 = vmul.f32 %v154, %v177
        %v189 = vlaneseq
        %v190 = vshrl.u32 %v189, 7
        %v191 = vsub.s32 0, %v190
        %v192 = vrot.slane %v155, %v191
        %v193 = vlaneseq
        %v194 = vshrl.u32 %v193, 7
        %v195 = vsub.s32 1, %v194
        %v196 = vrot.slane %v155, %v195
        %v197 = vlaneseq
        %v198 = vshrl.u32 %v197, 7
        %v199 = vsub.s32 2, %v198
        %v200 = vrot.slane %v155, %v199
        %v201 = vlaneseq
        %v202 = vshrl.u32 %v201, 7
        %v203 = vsub.s32 3, %v202
        %v204 = vrot.slane %v155, %v203
        %v205 = vlaneseq
        %v206 = vshrl.u32 %v205, 7
        %v207 = vsub.s32 4, %v206
        %v208 = vrot.slane %v155, %v207
        %v214 = vadd.f32 %v192, %v183
        %v215 = vadd.f32 %v196, %v184
        %v216 = vadd.f32 %v200, %v185
        %v217 = vadd.f32 %v204, %v186
        %v218 = vadd.f32 %v208, %v187
        %219 = vst [vmem:[%s147] sm:$0xff] %v214
        %220 = vst [vmem:[%s147 + $0x8] sm:$0xff] %v215
        %221 = vst [vmem:[%s147 + $0x10] sm:$0xff] %v216
        %222 = vst [vmem:[%s147 + $0x18] sm:$0xff] %v217
        %vm223 = vcmask 523264
        %224 = vst.msk [vmem:[%s147 + $0x20] sm:$0xff] %vm223, %v218
        %s225 = sand.u32 %s68, 1
        %s226 = scalar_lea.sflag [#allocation4], %s225
        %s227 = sand.u32 %s68, 1
        %s228 = smul.addr %s227, 40
        %s229 = scalar_lea.vmem [#allocation7], %s228
        // Predicated region
        $region37: #{tpu_custom_call.1} parent=27 // pred_check
          %p230 = pneg %p78
        $region38: #{tpu_custom_call.1} parent=27 // pred_check_branch
          %232 = sbr.rel (%p230) target = $region40
        $region39: #{tpu_custom_call.1} parent=27 // pred_region
          %s234 = ssub.s32 640, 640
          %235 = vsyncadd %s226, %s234
          %s236 = smul.addr %s18, 5
          %s237 = smul.addr %s236, 128
          %s238 = scalar_lea.hbm %s2, %s237
          %s240 = sshll.u32 %s229, 4
          %s241 = int_to_ptr.vmem [resolvable:$true] %s240
          %243 = dma.vmem_to_hbm [thread:$0]  %s241, 640, %s238, %s226
        $region40: #{tpu_custom_call.1} parent=27 // pred_fallthru
          _
      $region28: #{tpu_custom_call.1} parent=5 // pred_fallthru
        _
      %p244 = scmp.le.s32.totalorder 2, %s13
      // Predicated region
      $region41: #{tpu_custom_call.1} parent=5 // pred_check
        %p245 = pneg %p244
      $region42: #{tpu_custom_call.1} parent=5 // pred_check_branch
        %247 = sbr.rel (%p245) target = $region44
      $region43: #{tpu_custom_call.1} parent=5 // pred_region
        %s248 = ssub.s32 %s13, 2
        // Predicated region
        $region45: #{tpu_custom_call.1} parent=43 // pred_check
          %p249 = pneg %p84
        $region46: #{tpu_custom_call.1} parent=43 // pred_check_branch
          %251 = sbr.rel (%p249) target = $region48
        $region47: #{tpu_custom_call.1} parent=43 // pred_region
          %s252 = sand.u32 %s69, 1
          %s253 = scalar_lea.sflag [#allocation4], %s252
          %s254 = sand.u32 %s69, 1
          %s255 = smul.addr %s254, 40
          %s256 = scalar_lea.vmem [#allocation7], %s255
          %257 = dma.done %s253, 640
        $region48: #{tpu_custom_call.1} parent=43 // pred_fallthru
          _
      $region44: #{tpu_custom_call.1} parent=5 // pred_fallthru
        _
    $region6: #{tpu_custom_call.1} parent=1 // loop_footer
      %s17 = sadd.s32 1, %s13
    $region7: #{tpu_custom_call.1} parent=1 // loop_footer_branch
      %12 = sbr.rel target = $region3
    $region8: #{tpu_custom_call.1} parent=1 // loop_exit
      _
    %258 = vsyncpa [#allocation3], 1
    %s259 = scalar_lea.sflag [#allocation3], 1
    %260 = vsyncpa %s259, 1
    %261 = vsyncpa [#allocation6], 1
    %262 = vsyncpa [#allocation4], 1
    %s263 = scalar_lea.sflag [#allocation4], 1
    %264 = vsyncpa %s263, 1

</llo_original>
